<compile_context>
chip_gen: v5e
topology: v5e:2x2
jax: 0.10.0
libtpu: 0.0.40
codegen_flags: <defaults>
</compile_context>

<pallas_src>
import math

import jax
import jax.numpy as jnp
from jax.experimental import pallas as pl
from jax.experimental.pallas import tpu as pltpu


# --------------------------------------------------------------------------- #
# Kernels
# --------------------------------------------------------------------------- #
def _glu_split_kernel(a_ref, g_ref, o_ref):
    # out/gate halves already split by the BlockSpec DMA (lane-aligned tiles).
    a = a_ref[...].astype(jnp.float32)
    g = g_ref[...].astype(jnp.float32)
    s = 0.5 * jnp.tanh(0.5 * g) + 0.5  # == sigmoid(g), one transcendental
    o_ref[...] = (a * s).astype(o_ref.dtype)


def _glu_fused_kernel(x_ref, o_ref):
    # Fallback: split along lanes inside the kernel (n not 128-aligned).
    n = o_ref.shape[-1]
    a = x_ref[:, :n].astype(jnp.float32)
    g = x_ref[:, n:].astype(jnp.float32)
    s = 0.5 * jnp.tanh(0.5 * g) + 0.5
    o_ref[...] = (a * s).astype(o_ref.dtype)


# --------------------------------------------------------------------------- #
# Tiling helpers (all trace-time Python on static shapes)
# --------------------------------------------------------------------------- #
_TILE_TARGET_BYTES = 4 << 20   # ~4 MiB per input block (>=1 MiB => ~85% roofline)
_MAX_LANES = 4096              # lane-tile cap
_MAX_ROWS = 1024               # row-tile cap
_TARGET_GRID_STEPS = 8         # enough steps for v7x megacore + pipelining


def _largest_lane_tile(n: int, max_lanes: int = _MAX_LANES) -> int:
    """Largest multiple-of-128 divisor of n that is <= max_lanes (n % 128 == 0)."""
    best = 128
    for d in range(128, min(n, max_lanes) + 1, 128):
        if n % d == 0:
            best = d
    return best


def _cap_rows_for_steps(tm: int, m: int, sublane: int, lane_steps: int) -> int:
    """Cap the row tile so the grid has >= ~_TARGET_GRID_STEPS steps when the
    shape allows it (keeps both v7x TensorCores busy and the DMA pipeline full),
    never dropping below one sublane group of rows."""
    want_rows = -(-_TARGET_GRID_STEPS // max(lane_steps, 1))  # cdiv
    if want_rows <= 1 or m <= sublane:
        return tm
    rows = -(-m // want_rows)  # cdiv(m, want_rows)
    rows = max(sublane, (rows // sublane) * sublane)
    return min(tm, rows)


def _pick_row_tile(m: int, row_bytes: int, sublane: int, lane_steps: int) -> int:
    tm = max(1, _TILE_TARGET_BYTES // max(row_bytes, 1))
    tm = min(tm, _MAX_ROWS)
    tm = _cap_rows_for_steps(tm, m, sublane, lane_steps)
    if tm >= m:
        return m  # full extent: always a legal block dim
    return max(sublane, (tm // sublane) * sublane)


# --------------------------------------------------------------------------- #
# 2-D driver: GLU over the last dim of an (m, 2n) array
# --------------------------------------------------------------------------- #
def _glu_2d(x2d: jax.Array, n: int) -> jax.Array:
    m = x2d.shape[0]
    dtype = x2d.dtype
    itemsize = jnp.dtype(dtype).itemsize
    # Sublane packing: f32 -> 8 rows/vreg, bf16/f16 -> 16, 1-byte -> 32.
    sublane = max(8, 32 // max(itemsize, 1))

    cost = pl.CostEstimate(
        flops=4 * m * n,
        transcendentals=m * n,
        bytes_accessed=3 * m * n * itemsize,
    )

    if n % 128 == 0:
        # Lane-aligned path: out/gate split happens at the DMA via index_maps.
        tn = _largest_lane_tile(n)
        lane_blocks = n // tn
        tm = _pick_row_tile(m, tn * itemsize, sublane, lane_blocks)
        grid = (pl.cdiv(m, tm), lane_blocks)
        gate_blocks = lane_blocks  # gate half starts at lane-block index n // tn

        return pl.pallas_call(
            _glu_split_kernel,
            out_shape=jax.ShapeDtypeStruct((m, n), dtype),
            grid=grid,
            in_specs=[
                pl.BlockSpec((tm, tn), lambda i, j: (i, j)),                 # out half
                pl.BlockSpec((tm, tn), lambda i, j: (i, j + gate_blocks)),   # gate half
            ],
            out_specs=pl.BlockSpec((tm, tn), lambda i, j: (i, j)),
            compiler_params=pltpu.CompilerParams(
                dimension_semantics=("parallel", "parallel"),
                vmem_limit_bytes=48 << 20,   # <= v7x 64 MiB/TC; ample on v5e/v6e
            ),
            cost_estimate=cost,
        )(x2d, x2d)

    # Fallback path (n not a multiple of 128): full-extent lane blocks, split in
    # VMEM. Budget 4n bytes/row (2n in + n out + slack for the gate-slice
    # relayout copy) so the real footprint stays under vmem_limit_bytes.
    # TODO(synk): absurdly wide unaligned n (>~1M channels) could still exceed
    # VMEM with a single sublane group of rows; not handled.
    c = 2 * n
    tm_fb = _pick_row_tile(m, 4 * n * itemsize, sublane, 1)
    grid = (pl.cdiv(m, tm_fb),)

    return pl.pallas_call(
        _glu_fused_kernel,
        out_shape=jax.ShapeDtypeStruct((m, n), dtype),
        grid=grid,
        in_specs=[pl.BlockSpec((tm_fb, c), lambda i: (i, 0))],
        out_specs=pl.BlockSpec((tm_fb, n), lambda i: (i, 0)),
        compiler_params=pltpu.CompilerParams(
            dimension_semantics=("parallel",),
            vmem_limit_bytes=48 << 20,
        ),
        cost_estimate=cost,
    )(x2d)


# --------------------------------------------------------------------------- #
# Public wrapper (matches torch GLU module semantics)
# --------------------------------------------------------------------------- #
def glu(x: jax.Array, dim: int = -1) -> jax.Array:
    """out, gate = x.chunk(2, dim); return out * sigmoid(gate)."""
    ndim = x.ndim
    dim = dim % ndim
    c = x.shape[dim]
    if c % 2 != 0:
        raise ValueError("GLU requires an even size along the chunked dimension")
    c_half = c // 2

    # Free (contiguous) reshape: chunk axis becomes the slow half of the last
    # dim of a 2-D view. No moveaxis / HBM transpose for any `dim`.
    outer = math.prod(x.shape[:dim]) if dim > 0 else 1
    inner = math.prod(x.shape[dim + 1:]) if dim < ndim - 1 else 1
    n = c_half * inner

    x2d = x.reshape(outer, 2 * n)
    out2d = _glu_2d(x2d, n)

    out_shape = x.shape[:dim] + (c_half,) + x.shape[dim + 1:]
    return out2d.reshape(out_shape)


# --------------------------------------------------------------------------- #
# Self-test
# --------------------------------------------------------------------------- #
if __name__ == "__main__":
    key = jax.random.PRNGKey(0)
    k1, k2, k3, k4 = jax.random.split(key, 4)

    def ref(x, d):
        a, g = jnp.split(x, 2, axis=d)
        return a * jax.nn.sigmoid(g)

    # 1) Small hidden, GLU over last dim (fallback path, n = 16).
    x1 = jax.random.normal(k1, (2, 8, 32), dtype=jnp.float32)
    y1 = glu(x1, dim=-1)

    # 2) 128-aligned hidden -> lane-aligned DMA-split path (n = 256).
    x2 = jax.random.normal(k2, (2, 8, 512), dtype=jnp.float32)
    y2 = glu(x2, dim=-1)

    # 3) GLU over a non-trailing dim (no transpose; n = c_half * inner = 128).
    x3 = jax.random.normal(k3, (2, 8, 32), dtype=jnp.float32)
    y3 = glu(x3, dim=1)

    # 4) bf16, non-power-of-two-but-128-multiple width (n = 384, tn = 384).
    x4 = jax.random.normal(k4, (2, 4, 768), dtype=jnp.bfloat16)
    y4 = glu(x4, dim=-1)

    jax.block_until_ready((y1, y2, y3, y4))

    assert y1.shape == (2, 8, 16)
    assert jnp.allclose(y1, ref(x1, -1), atol=1e-5)
    assert y2.shape == (2, 8, 256)
    assert jnp.allclose(y2, ref(x2, -1), atol=1e-5)
    assert y3.shape == (2, 4, 32)
    assert jnp.allclose(y3, ref(x3, 1), atol=1e-5)
    assert y4.shape == (2, 4, 384)
    ref4 = ref(x4.astype(jnp.float32), -1)
    assert jnp.allclose(y4.astype(jnp.float32), ref4, atol=3e-2)

    print("KERNEL_OK")
</pallas_src>

<mosaic_0001>
module attributes {stable_mosaic.version = 11 : i64} {
  func.func @_glu_fused_kernel(%arg0: i32, %arg1: memref<8x32xf32, #tpu.memory_space<vmem>>, %arg2: memref<8x16xf32, #tpu.memory_space<vmem>>) attributes {dimension_semantics = [#tpu.dimension_semantics<parallel>], iteration_bounds = array<i64: 2>, scalar_prefetch = 0 : i64, scratch_operands = 0 : i64, tpu.core_type = #tpu.core_type<tc>, window_params = [{transform_indices = @transform_0, window_bounds = array<i64: 8, 32>}, {transform_indices = @transform_1, window_bounds = array<i64: 8, 16>}]} {
    %c0 = arith.constant 0 : index
    %c0_0 = arith.constant 0 : index
    %0 = vector.load %arg1[%c0, %c0_0] : memref<8x32xf32, #tpu.memory_space<vmem>>, vector<8x16xf32>
    %c0_1 = arith.constant 0 : index
    %c16 = arith.constant 16 : index
    %1 = vector.load %arg1[%c0_1, %c16] : memref<8x32xf32, #tpu.memory_space<vmem>>, vector<8x16xf32>
    %cst = arith.constant 5.000000e-01 : f32
    %2 = vector.broadcast %cst : f32 to vector<8x16xf32>
    %3 = arith.mulf %2, %1 : vector<8x16xf32>
    %4 = math.tanh %3 : vector<8x16xf32>
    %cst_2 = arith.constant 5.000000e-01 : f32
    %5 = vector.broadcast %cst_2 : f32 to vector<8x16xf32>
    %6 = arith.mulf %5, %4 : vector<8x16xf32>
    %cst_3 = arith.constant 5.000000e-01 : f32
    %7 = vector.broadcast %cst_3 : f32 to vector<8x16xf32>
    %8 = arith.addf %6, %7 : vector<8x16xf32>
    %9 = arith.mulf %0, %8 : vector<8x16xf32>
    %c0_4 = arith.constant 0 : index
    %c0_5 = arith.constant 0 : index
    %10 = vector.load %arg2[%c0_4, %c0_5] : memref<8x16xf32, #tpu.memory_space<vmem>>, vector<8x16xf32>
    tpu.vector_store %arg2[%c0_4, %c0_5], %9 {strides = array<i32>} : memref<8x16xf32, #tpu.memory_space<vmem>>, vector<8x16xf32>,
    return
  }
  func.func @transform_0(%arg0: i32) -> (i32, i32) {
    %c0_i32 = arith.constant 0 : i32
    %c0_i32_0 = arith.constant 0 : i32
    return %arg0, %c0_i32 : i32, i32
  }
  func.func @transform_1(%arg0: i32) -> (i32, i32) {
    %c0_i32 = arith.constant 0 : i32
    %c0_i32_0 = arith.constant 0 : i32
    return %arg0, %c0_i32 : i32, i32
  }
}

</mosaic_0001>

<llo_original>
// kernel: tpu_custom_call.1
$region0: #{tpu_custom_call.1}
  #allocation0 [shape = 'u32[]', space=smem, size = 0x4, offset = 0x4, fixed_abs, tag = 'smem constant byte address 0x4 - core index']
  #allocation1 [shape = 'u32[72,128]{1,0:T(1,128)}', space=vmem, size = 0x9000, scoped, tag = 'internal scratch']
  %s0 = inlined_call_operand.hbm [shape: f32[16,32], index: 0, kind: input, shape index: {}]
  %s1 = inlined_call_operand.hbm [shape: f32[16,16], index: 1, kind: output, shape index: {}]
  %s2 = sld [smem:[#allocation0]]
  $region41: #{tpu_custom_call.1} parent=0
    _
  %s4 = ssub.s32 1, %s2
  %s5 = scalar_select 0, %s4, %s2
  $region1: #{tpu_custom_call.1} parent=0
    #allocation2 [shape = 'u8[8192]{0}', space=vmem, size = 0x2000, scoped, tag = 'input window, operand 0']
    #allocation3 [shape = 's32[2]{0}', space=sflag, size = 0x8, scoped, tag = 'scoped memory for tpu_custom_call.1']
    #allocation4 [shape = 's32[2]{0}', space=sflag, size = 0x8, scoped, tag = 'scoped memory for tpu_custom_call.1']
    #allocation5 [shape = 'u8[8192]{0}', space=vmem, size = 0x2000, scoped, tag = 'output window, operand 0']
    %6 = vsyncpa [#allocation3], 0
    %s7 = scalar_lea.sflag [#allocation3], 1
    %8 = vsyncpa %s7, 0
    %9 = vsyncpa [#allocation4], 0
    %s10 = scalar_lea.sflag [#allocation4], 1
    %11 = vsyncpa %s10, 0
    loop: start=0, step=1, limit=4
    $region2: #{tpu_custom_call.1} parent=1 // loop_pre_header
      _
    $region3: #{tpu_custom_call.1} parent=1 // loop_header
      %s13 = sphi 0, %s17
      %p14 = scmp.ge.s32.totalorder %s13, 4
      %s23 = sphi 0, %s25
      %s26 = sphi 0, %s23
      %s27 = sphi 0, %s26
      %s43 = sphi 0, %s27
      %s49 = sphi 0, %s51
      %s52 = sphi 0, %s49
      %s53 = sphi 0, %s52
      %s69 = sphi 0, %s53
    $region4: #{tpu_custom_call.1} parent=1 // loop_header_branch
      %16 = sbr.rel (%p14) target = $region8
    $region5: #{tpu_custom_call.1} parent=1 // loop_body
      %s18 = ssub.s32 %s13, 1
      %s19 = ssub.s32 %s13, 2
      %s20 = sadd.s32 %s13, 1
      %s21 = ssub.s32 %s13, %s20
      %p22 = scmp.eq.s32.totalorder %s21, 0
      %s24 = sadd.s32 %s23, 1
      %s25 = scalar_select %p22, %s23, %s24
      %p28 = pneg %p22
      %p29 = scmp.eq.s32.totalorder %s13, 1
      %p30 = por %p28, %p29
      %p31 = scmp.ne.s32.totalorder %s23, %s26
      %p32 = scmp.eq.s32.totalorder %s13, 0
      %p33 = por %p31, %p32
      %p34 = scmp.ne.s32.totalorder %s23, %s26
      %p35 = scmp.eq.s32.totalorder %s18, 1
      %p36 = por %p34, %p35
      %p37 = scmp.ne.s32.totalorder %s26, %s27
      %p38 = scmp.eq.s32.totalorder %s18, 0
      %p39 = por %p37, %p38
      %p40 = scmp.ne.s32.totalorder %s26, %s27
      %p41 = scmp.eq.s32.totalorder %s19, 1
      %p42 = por %p40, %p41
      %p44 = scmp.ne.s32.totalorder %s27, %s43
      %p45 = scmp.eq.s32.totalorder %s19, 0
      %p46 = por %p44, %p45
      %s47 = ssub.s32 %s13, %s20
      %p48 = scmp.eq.s32.totalorder %s47, 0
      %s50 = sadd.s32 %s49, 1
      %s51 = scalar_select %p48, %s49, %s50
      %p54 = pneg %p48
      %p55 = scmp.eq.s32.totalorder %s13, 1
      %p56 = por %p54, %p55
      %p57 = scmp.ne.s32.totalorder %s49, %s52
      %p58 = scmp.eq.s32.totalorder %s13, 0
      %p59 = por %p57, %p58
      %p60 = scmp.ne.s32.totalorder %s49, %s52
      %p61 = scmp.eq.s32.totalorder %s18, 1
      %p62 = por %p60, %p61
      %p63 = scmp.ne.s32.totalorder %s52, %s53
      %p64 = scmp.eq.s32.totalorder %s18, 0
      %p65 = por %p63, %p64
      %p66 = scmp.ne.s32.totalorder %s52, %s53
      %p67 = scmp.eq.s32.totalorder %s19, 1
      %p68 = por %p66, %p67
      %p70 = scmp.ne.s32.totalorder %s53, %s69
      %p71 = scmp.eq.s32.totalorder %s19, 0
      %p72 = por %p70, %p71
      %p73 = scmp.le.s32.totalorder 1, %s13
      %p74 = scmp.lt.s32.totalorder %s13, 3
      %p75 = pnand %p73, %p74
      %p76 = pneg %p75
      // Predicated region
      $region9: #{tpu_custom_call.1} parent=5 // pred_check
        _
      $region10: #{tpu_custom_call.1} parent=5 // pred_check_branch
        %78 = sbr.rel (%p75) target = $region12
      $region11: #{tpu_custom_call.1} parent=5 // pred_region
        %s79 = ssub.s32 %s13, 1
      $region12: #{tpu_custom_call.1} parent=5 // pred_fallthru
        _
      %p80 = scmp.lt.s32.totalorder %s13, 2
      // Predicated region
      $region13: #{tpu_custom_call.1} parent=5 // pred_check
        %p81 = pneg %p80
      $region14: #{tpu_custom_call.1} parent=5 // pred_check_branch
        %83 = sbr.rel (%p81) target = $region16
      $region15: #{tpu_custom_call.1} parent=5 // pred_region
        // Predicated region
        $region17: #{tpu_custom_call.1} parent=15 // pred_check
          %p84 = pneg %p33
        $region18: #{tpu_custom_call.1} parent=15 // pred_check_branch
          %86 = sbr.rel (%p84) target = $region20
        $region19: #{tpu_custom_call.1} parent=15 // pred_region
          %s87 = sand.u32 %s23, 1
          %s88 = scalar_lea.sflag [#allocation3], %s87
          %s89 = sand.u32 %s23, 1
          %s90 = smul.addr %s89, 8
          %s91 = scalar_lea.vmem [#allocation2], %s90
          %93 = vsyncadd %s88, 0
          %s94 = smul.addr %s13, 8
          %s95 = scalar_lea.hbm %s0, %s94
          %s97 = sshll.u32 %s95, 4
          %s98 = int_to_ptr.hbm [resolvable:$true] %s97
          %s99 = sshll.u32 %s91, 4
          %s100 = int_to_ptr.vmem [resolvable:$true] %s99
          %102 = dma.hbm_to_vmem [thread:$0]  %s98, 128, %s100, %s88
        $region20: #{tpu_custom_call.1} parent=15 // pred_fallthru
          _
      $region16: #{tpu_custom_call.1} parent=5 // pred_fallthru
        _
      %p103 = scmp.le.s32.totalorder 1, %s13
      %p104 = scmp.lt.s32.totalorder %s13, 3
      %p105 = pnand %p103, %p104
      %p106 = pneg %p105
      // Predicated region
      $region21: #{tpu_custom_call.1} parent=5 // pred_check
        _
      $region22: #{tpu_custom_call.1} parent=5 // pred_check_branch
        %108 = sbr.rel (%p105) target = $region24
      $region23: #{tpu_custom_call.1} parent=5 // pred_region
        %s109 = ssub.s32 %s13, 1
        %s110 = sand.u32 %s26, 1
        %s111 = scalar_lea.sflag [#allocation3], %s110
        %s112 = sand.u32 %s26, 1
        %s113 = smul.addr %s112, 8
        %s114 = scalar_lea.vmem [#allocation2], %s113
        // Predicated region
        $region25: #{tpu_custom_call.1} parent=23 // pred_check
          %p115 = pneg %p39
        $region26: #{tpu_custom_call.1} parent=23 // pred_check_branch
          %117 = sbr.rel (%p115) target = $region28
        $region27: #{tpu_custom_call.1} parent=23 // pred_region
          %119 = dma.done %s111, 128
        $region28: #{tpu_custom_call.1} parent=23 // pred_fallthru
          _
        %s120 = sand.u32 %s26, 1
        %s121 = scalar_lea.sflag [#allocation3], %s120
        %s122 = sand.u32 %s26, 1
        %s123 = smul.addr %s122, 8
        %s124 = scalar_lea.vmem [#allocation2], %s123
        %p125 = pneg %p39
        %p126 = pneg %p36
        %p127 = pneg %p65
        %p128 = pneg %p62
        %s129 = sand.u32 %s52, 1
        %s130 = scalar_lea.sflag [#allocation4], %s129
        %s131 = sand.u32 %s52, 1
        %s132 = smul.addr %s131, 8
        %s133 = scalar_lea.vmem [#allocation5], %s132
        %v134 = vld [vmem:[%s114] sm:$0xff]
        %v135 = vmul.f32 %v134, 0.5
        %v136 = vtanh.pop %v135
        %v137 = vmul.f32 %v136, 0.5
        %v138 = vadd.f32 %v137, 0.5
        %140 = vrot.lane.b32.xlu0 %v138, 112
        %v141 = vpop.permute.xlu0 %140
        %v143 = vmul.f32 %v134, %v141
        %vm144 = vcmask 130048
        %145 = vst.msk [vmem:[%s133] sm:$0xff] %vm144, %v143
        %s146 = sand.u32 %s52, 1
        %s147 = scalar_lea.sflag [#allocation4], %s146
        %s148 = sand.u32 %s52, 1
        %s149 = smul.addr %s148, 8
        %s150 = scalar_lea.vmem [#allocation5], %s149
        // Predicated region
        $region29: #{tpu_custom_call.1} parent=23 // pred_check
          %p151 = pneg %p62
        $region30: #{tpu_custom_call.1} parent=23 // pred_check_branch
          %153 = sbr.rel (%p151) target = $region32
        $region31: #{tpu_custom_call.1} parent=23 // pred_region
          %155 = vsyncadd %s147, 0
          %s156 = smul.addr %s18, 8
          %s157 = scalar_lea.hbm %s1, %s156
          %s159 = sshll.u32 %s150, 4
          %s160 = int_to_ptr.vmem [resolvable:$true] %s159
          %s161 = sshll.u32 %s157, 4
          %s162 = int_to_ptr.hbm [resolvable:$true] %s161
          %164 = dma.vmem_to_hbm [thread:$0]  %s160, 128, %s162, %s147
        $region32: #{tpu_custom_call.1} parent=23 // pred_fallthru
          _
      $region24: #{tpu_custom_call.1} parent=5 // pred_fallthru
        _
      %p165 = scmp.le.s32.totalorder 2, %s13
      // Predicated region
      $region33: #{tpu_custom_call.1} parent=5 // pred_check
        %p166 = pneg %p165
      $region34: #{tpu_custom_call.1} parent=5 // pred_check_branch
        %168 = sbr.rel (%p166) target = $region36
      $region35: #{tpu_custom_call.1} parent=5 // pred_region
        %s169 = ssub.s32 %s13, 2
        // Predicated region
        $region37: #{tpu_custom_call.1} parent=35 // pred_check
          %p170 = pneg %p68
        $region38: #{tpu_custom_call.1} parent=35 // pred_check_branch
          %172 = sbr.rel (%p170) target = $region40
        $region39: #{tpu_custom_call.1} parent=35 // pred_region
          %s173 = sand.u32 %s53, 1
          %s174 = scalar_lea.sflag [#allocation4], %s173
          %s175 = sand.u32 %s53, 1
          %s176 = smul.addr %s175, 8
          %s177 = scalar_lea.vmem [#allocation5], %s176
          %179 = dma.done %s174, 128
        $region40: #{tpu_custom_call.1} parent=35 // pred_fallthru
          _
      $region36: #{tpu_custom_call.1} parent=5 // pred_fallthru
        _
    $region6: #{tpu_custom_call.1} parent=1 // loop_footer
      %s17 = sadd.s32 1, %s13
    $region7: #{tpu_custom_call.1} parent=1 // loop_footer_branch
      %12 = sbr.rel target = $region3
    $region8: #{tpu_custom_call.1} parent=1 // loop_exit
      _
    %180 = vsyncpa [#allocation3], 1
    %s181 = scalar_lea.sflag [#allocation3], 1
    %182 = vsyncpa %s181, 1
    %183 = vsyncpa [#allocation4], 1
    %s184 = scalar_lea.sflag [#allocation4], 1
    %185 = vsyncpa %s184, 1

</llo_original>
